<compile_context>
chip_gen: v7x
topology: tpu7x:2x2x1
jax: 0.10.0
libtpu: 0.0.40
codegen_flags: <defaults>
</compile_context>

<pallas_src>
import functools

import jax
import jax.numpy as jnp
from jax import lax
from jax.experimental import pallas as pl
from jax.experimental.pallas import tpu as pltpu

LANES = 128  # lane-dense feature width for the padded table / output slab


def _round_up(x, m):
    return ((x + m - 1) // m) * m


def _mxu_rows():
    """MXU M-dimension to fill per pass: 128 on v5e (4x128^2), 256 on v6e/v7x (2x256^2)."""
    try:
        kind = jax.devices()[0].device_kind.lower()
    except Exception:
        return 256
    if "v5 lite" in kind or "v5lite" in kind or "v5e" in kind:
        return 128
    return 256


def _pick_bag_tile(B):
    rows = _mxu_rows()
    if B <= rows:
        # Single grid step covering every bag, sublane (8) aligned.
        return max(8, _round_up(B, 8))
    # MXU-filling tile; B > rows guarantees >= 2 grid steps so v7x's two TensorCores
    # both get work under dimension_semantics=("parallel",).
    return rows


def embbag_softmax_kernel(idx_ref, w_ref, o_ref, *, L, D, approx_recip):
    """One grid step: TB bags -> mean-pooled embedding -> masked softmax.

    idx_ref : (TB, L)  int32      indices for TB bags
    w_ref   : (Vp, Dp) f32/bf16   zero-padded embedding table (Dp = 128 lane-dense)
    o_ref   : (TB, Dp) f32/bf16   softmax over the first D lanes; padded lanes are 0
    """
    idx = idx_ref[...]                                    # (TB, L) int32
    TB = idx.shape[0]
    Vp, Dp = w_ref.shape

    # Per-bag vocab counts, accumulated in int32 (no per-iteration float converts).
    iota_v = lax.broadcasted_iota(jnp.int32, (TB, Vp), 1)
    counts = jnp.zeros((TB, Vp), jnp.int32)
    for l in range(L):  # L is a small compile-time constant; fully unrolled
        counts = counts + (iota_v == idx[:, l:l + 1]).astype(jnp.int32)

    # Single cast at the MXU boundary (counts <= L are exact integers in bf16 for L <= 256).
    lhs = counts.astype(w_ref.dtype)
    bag = jnp.dot(lhs, w_ref[...], preferred_element_type=jnp.float32)   # (TB, Dp) f32
    bag = bag * jnp.float32(1.0 / L)                      # mean scale post-dot, in f32

    # Softmax over the real D features only; padded lanes masked so exp(...) == 0 and are
    # written back as exact zeros.  Logits stay f32 (preferred_element_type), so the -1e30
    # mask constant is always in range.
    lane = lax.broadcasted_iota(jnp.int32, (TB, Dp), 1)
    valid = lane < D
    bag = jnp.where(valid, bag, jnp.float32(-1e30))
    m = jnp.max(bag, axis=-1, keepdims=True)
    e = jnp.exp(bag - m)
    e = jnp.where(valid, e, jnp.float32(0.0))
    s = jnp.sum(e, axis=-1, keepdims=True)
    if approx_recip:
        out = e * pl.reciprocal(s, approx=True)           # EUP slot, ~1e-3 row-sum error
    else:
        out = e / s                                       # exact probability rows
    o_ref[...] = out.astype(o_ref.dtype)


def prepare_embedding_table(weight, table_dtype=jnp.float32):
    """Pad (V, D) weights to a lane-dense (Vp, 128) table ONCE (hoisted out of the hot path).

    Returns (table, D).  Use table_dtype=jnp.bfloat16 on v6e/v7x for the fast MXU path.
    """
    V, D = weight.shape
    VP = _round_up(V, 8)
    table = jnp.zeros((VP, LANES), table_dtype).at[:V, :D].set(weight.astype(table_dtype))
    return table, D


def sparse_gradient_forward(indices, table, *, num_features, bag_tile=None,
                            out_dtype=jnp.float32, approx_recip=True):
    """indices: (B, L) int, table: (Vp, 128) prepared weights -> (B, D) softmax output."""
    B, L = indices.shape
    VP, DP = table.shape

    if bag_tile is None:
        bag_tile = _pick_bag_tile(B)
    BP = _round_up(B, bag_tile)

    idx = indices.astype(jnp.int32)
    if BP != B:
        # Ragged tail only; skipped entirely when B % bag_tile == 0 (no extra HBM pass).
        idx = jnp.zeros((BP, L), jnp.int32).at[:B].set(idx)

    out_padded = pl.pallas_call(
        functools.partial(embbag_softmax_kernel, L=L, D=num_features,
                          approx_recip=approx_recip),
        out_shape=jax.ShapeDtypeStruct((BP, DP), out_dtype),
        grid=(BP // bag_tile,),
        in_specs=[
            pl.BlockSpec((bag_tile, L), lambda i: (i, 0)),   # per-step index tile
            pl.BlockSpec((VP, DP), lambda i: (0, 0)),        # tiny table, resident all steps
        ],
        out_specs=pl.BlockSpec((bag_tile, DP), lambda i: (i, 0)),
        compiler_params=pltpu.CompilerParams(
            dimension_semantics=("parallel",),               # v7x: bags split across 2 TCs
        ),
    )(idx, table)

    # Sliced inside the same jit as the call so it fuses with the consumer.
    return out_padded[:B, :num_features]


def reference_forward(indices, weight):
    """Pure-JAX reference: EmbeddingBag(mean) + softmax(dim=1)."""
    emb = weight[indices]                      # (B, L, D)
    bag = jnp.mean(emb, axis=1)                # (B, D)
    return jax.nn.softmax(bag, axis=1)


if __name__ == "__main__":
    key = jax.random.PRNGKey(0)
    k_w, k_x = jax.random.split(key)

    V, D = 10, 10          # nn.EmbeddingBag(10, 10)
    B, L = 2, 8            # small batch of bags, 8 indices per bag

    weight = jax.random.normal(k_w, (V, D), dtype=jnp.float32)
    x = jax.random.randint(k_x, (B, L), 0, V, dtype=jnp.int32)

    ref = reference_forward(x, weight)

    # --- f32 MXU-operand path (bit-faithful at toy scale) -----------------------------
    table_f32, d = prepare_embedding_table(weight, jnp.float32)
    fwd_f32 = jax.jit(functools.partial(sparse_gradient_forward, num_features=d))
    out = jax.block_until_ready(fwd_f32(x, table_f32))
    assert out.shape == (B, D)
    assert jnp.allclose(out, ref, atol=1e-3, rtol=1e-3), "f32 Pallas kernel mismatch"

    # --- bf16 MXU-operand / bf16-store path (scaled-up v6e/v7x config) ----------------
    table_bf16, _ = prepare_embedding_table(weight, jnp.bfloat16)
    fwd_bf16 = jax.jit(functools.partial(sparse_gradient_forward, num_features=d,
                                         out_dtype=jnp.bfloat16))
    out_bf = jax.block_until_ready(fwd_bf16(x, table_bf16))
    assert jnp.allclose(out_bf.astype(jnp.float32), ref, atol=2e-2, rtol=2e-2), \
        "bf16 Pallas kernel mismatch"

    print("KERNEL_OK")
</pallas_src>

<mosaic_0001>
module attributes {stable_mosaic.version = 11 : i64} {
  func.func @embbag_softmax_kernel(%arg0: i32, %arg1: memref<8x8xi32, #tpu.memory_space<vmem>>, %arg2: memref<16x128xf32, #tpu.memory_space<vmem>>, %arg3: memref<8x128xf32, #tpu.memory_space<vmem>>) attributes {dimension_semantics = [#tpu.dimension_semantics<parallel>], iteration_bounds = array<i64: 1>, scalar_prefetch = 0 : i64, scratch_operands = 0 : i64, tpu.core_type = #tpu.core_type<tc>, window_params = [{transform_indices = @transform_0, window_bounds = array<i64: 8, 8>}, {pipeline_mode = #tpu.pipeline_mode<synchronous>, transform_indices = @transform_1, window_bounds = array<i64: 16, 128>}, {transform_indices = @transform_2, window_bounds = array<i64: 8, 128>}]} {
    %c0 = arith.constant 0 : index
    %c0_0 = arith.constant 0 : index
    %0 = vector.load %arg1[%c0, %c0_0] : memref<8x8xi32, #tpu.memory_space<vmem>>, vector<8x8xi32>
    %1 = tpu.iota {dimensions = array<i32: 1>} : vector<8x16xi32>
    %c0_i32 = arith.constant 0 : i32
    %2 = vector.broadcast %c0_i32 : i32 to vector<8x16xi32>
    %3 = vector.extract_strided_slice %0 {offsets = [0, 0], sizes = [8, 1], strides = [1, 1]} : vector<8x8xi32> to vector<8x1xi32>
    %4 = vector.broadcast %3 : vector<8x1xi32> to vector<8x16xi32>
    %5 = arith.cmpi eq, %1, %4 : vector<8x16xi32>
    %6 = arith.extui %5 : vector<8x16xi1> to vector<8x16xi32>
    %7 = arith.addi %2, %6 : vector<8x16xi32>
    %8 = vector.extract_strided_slice %0 {offsets = [0, 1], sizes = [8, 1], strides = [1, 1]} : vector<8x8xi32> to vector<8x1xi32>
    %9 = vector.broadcast %8 : vector<8x1xi32> to vector<8x16xi32>
    %10 = arith.cmpi eq, %1, %9 : vector<8x16xi32>
    %11 = arith.extui %10 : vector<8x16xi1> to vector<8x16xi32>
    %12 = arith.addi %7, %11 : vector<8x16xi32>
    %13 = vector.extract_strided_slice %0 {offsets = [0, 2], sizes = [8, 1], strides = [1, 1]} : vector<8x8xi32> to vector<8x1xi32>
    %14 = vector.broadcast %13 : vector<8x1xi32> to vector<8x16xi32>
    %15 = arith.cmpi eq, %1, %14 : vector<8x16xi32>
    %16 = arith.extui %15 : vector<8x16xi1> to vector<8x16xi32>
    %17 = arith.addi %12, %16 : vector<8x16xi32>
    %18 = vector.extract_strided_slice %0 {offsets = [0, 3], sizes = [8, 1], strides = [1, 1]} : vector<8x8xi32> to vector<8x1xi32>
    %19 = vector.broadcast %18 : vector<8x1xi32> to vector<8x16xi32>
    %20 = arith.cmpi eq, %1, %19 : vector<8x16xi32>
    %21 = arith.extui %20 : vector<8x16xi1> to vector<8x16xi32>
    %22 = arith.addi %17, %21 : vector<8x16xi32>
    %23 = vector.extract_strided_slice %0 {offsets = [0, 4], sizes = [8, 1], strides = [1, 1]} : vector<8x8xi32> to vector<8x1xi32>
    %24 = vector.broadcast %23 : vector<8x1xi32> to vector<8x16xi32>
    %25 = arith.cmpi eq, %1, %24 : vector<8x16xi32>
    %26 = arith.extui %25 : vector<8x16xi1> to vector<8x16xi32>
    %27 = arith.addi %22, %26 : vector<8x16xi32>
    %28 = vector.extract_strided_slice %0 {offsets = [0, 5], sizes = [8, 1], strides = [1, 1]} : vector<8x8xi32> to vector<8x1xi32>
    %29 = vector.broadcast %28 : vector<8x1xi32> to vector<8x16xi32>
    %30 = arith.cmpi eq, %1, %29 : vector<8x16xi32>
    %31 = arith.extui %30 : vector<8x16xi1> to vector<8x16xi32>
    %32 = arith.addi %27, %31 : vector<8x16xi32>
    %33 = vector.extract_strided_slice %0 {offsets = [0, 6], sizes = [8, 1], strides = [1, 1]} : vector<8x8xi32> to vector<8x1xi32>
    %34 = vector.broadcast %33 : vector<8x1xi32> to vector<8x16xi32>
    %35 = arith.cmpi eq, %1, %34 : vector<8x16xi32>
    %36 = arith.extui %35 : vector<8x16xi1> to vector<8x16xi32>
    %37 = arith.addi %32, %36 : vector<8x16xi32>
    %38 = vector.extract_strided_slice %0 {offsets = [0, 7], sizes = [8, 1], strides = [1, 1]} : vector<8x8xi32> to vector<8x1xi32>
    %39 = vector.broadcast %38 : vector<8x1xi32> to vector<8x16xi32>
    %40 = arith.cmpi eq, %1, %39 : vector<8x16xi32>
    %41 = arith.extui %40 : vector<8x16xi1> to vector<8x16xi32>
    %42 = arith.addi %37, %41 : vector<8x16xi32>
    %43 = arith.sitofp %42 : vector<8x16xi32> to vector<8x16xf32>
    %c0_1 = arith.constant 0 : index
    %c0_2 = arith.constant 0 : index
    %44 = vector.load %arg2[%c0_1, %c0_2] : memref<16x128xf32, #tpu.memory_space<vmem>>, vector<16x128xf32>
    %cst = arith.constant dense<0.000000e+00> : vector<8x128xf32>
    %45 = tpu.matmul %43, %44, %cst {dimension_numbers = #tpu.dot_dimension_numbers<[1], [0], [0], [1], [0, 0, 1, 1], [], []>} : vector<8x16xf32>, vector<16x128xf32>, vector<8x128xf32> -> vector<8x128xf32>
    %cst_3 = arith.constant 1.250000e-01 : f32
    %46 = vector.broadcast %cst_3 : f32 to vector<8x128xf32>
    %47 = arith.mulf %45, %46 : vector<8x128xf32>
    %48 = tpu.iota {dimensions = array<i32: 1>} : vector<8x128xi32>
    %c10_i32 = arith.constant 10 : i32
    %49 = vector.broadcast %c10_i32 : i32 to vector<8x128xi32>
    %50 = arith.cmpi slt, %48, %49 : vector<8x128xi32>
    %cst_4 = arith.constant -1.000000e+30 : f32
    %51 = vector.broadcast %cst_4 : f32 to vector<8x128xf32>
    %52 = arith.select %50, %47, %51 : vector<8x128xi1>, vector<8x128xf32>
    %cst_5 = arith.constant dense<0xFF800000> : vector<8xf32>
    %53 = vector.multi_reduction <maximumf>, %52, %cst_5 [1] : vector<8x128xf32> to vector<8xf32>
    %54 = vector.shape_cast %53 : vector<8xf32> to vector<8x1xf32>
    %55 = vector.broadcast %54 : vector<8x1xf32> to vector<8x128xf32>
    %56 = arith.subf %52, %55 : vector<8x128xf32>
    %57 = math.exp %56 : vector<8x128xf32>
    %cst_6 = arith.constant 0.000000e+00 : f32
    %58 = vector.broadcast %cst_6 : f32 to vector<8x128xf32>
    %59 = arith.select %50, %57, %58 : vector<8x128xi1>, vector<8x128xf32>
    %cst_7 = arith.constant dense<0.000000e+00> : vector<8xf32>
    %60 = vector.multi_reduction <add>, %59, %cst_7 [1] : vector<8x128xf32> to vector<8xf32>
    %61 = vector.shape_cast %60 : vector<8xf32> to vector<8x1xf32>
    %62 = tpu.reciprocal %61 {approx = true} : vector<8x1xf32> -> vector<8x1xf32>
    %63 = vector.broadcast %62 : vector<8x1xf32> to vector<8x128xf32>
    %64 = arith.mulf %59, %63 : vector<8x128xf32>
    %c0_8 = arith.constant 0 : index
    %c0_9 = arith.constant 0 : index
    %65 = vector.load %arg3[%c0_8, %c0_9] : memref<8x128xf32, #tpu.memory_space<vmem>>, vector<8x128xf32>
    tpu.vector_store %arg3[%c0_8, %c0_9], %64 {strides = array<i32>} : memref<8x128xf32, #tpu.memory_space<vmem>>, vector<8x128xf32>,
    return
  }
  func.func @transform_0(%arg0: i32) -> (i32, i32) {
    %c0_i32 = arith.constant 0 : i32
    %c0_i32_0 = arith.constant 0 : i32
    return %arg0, %c0_i32 : i32, i32
  }
  func.func @transform_1(%arg0: i32) -> (i32, i32) {
    %c0_i32 = arith.constant 0 : i32
    %c0_i32_0 = arith.constant 0 : i32
    %c0_i32_1 = arith.constant 0 : i32
    return %c0_i32, %c0_i32_0 : i32, i32
  }
  func.func @transform_2(%arg0: i32) -> (i32, i32) {
    %c0_i32 = arith.constant 0 : i32
    %c0_i32_0 = arith.constant 0 : i32
    return %arg0, %c0_i32 : i32, i32
  }
}

</mosaic_0001>

<llo_original>
// kernel: sparse_gradient_forward.1
$region0: #{sparse_gradient_forward.1}
  #allocation0 [shape = 'u32[]', space=smem, size = 0x4, offset = 0x4, fixed_abs, tag = 'smem constant byte address 0x4 - core index']
  #allocation1 [shape = 'u32[144,128]{1,0:T(1,128)}', space=vmem, size = 0x12000, scoped, tag = 'internal scratch']
  %s0 = inlined_call_operand.vmem [shape: s32[8,8], index: 0, kind: input, shape index: {}]
  %s1 = inlined_call_operand.hbm [shape: f32[16,128], index: 1, kind: input, shape index: {}]
  %s2 = inlined_call_operand.vmem [shape: f32[8,128], index: 2, kind: output, shape index: {}]
  %s3 = sld [smem:[#allocation0]]
  $region22: #{sparse_gradient_forward.1} parent=0
    _
  %s5 = ssub.s32 1, %s3
  %s6 = scalar_select 0, %s5, %s3
  $region1: #{sparse_gradient_forward.1} parent=0
    #allocation2 [shape = 'u8[8192]{0}', space=vmem, size = 0x2000, scoped, tag = 'input window, operand 1, single buffered']
    #allocation3 [shape = 's32[1]{0}', space=sflag, size = 0x4, scoped, tag = 'scoped memory for sparse_gradient_forward.1']
    %7 = vsyncpa [#allocation3], 0
    // Predicated region
    $region2: #{sparse_gradient_forward.1} parent=1 // pred_check
      _
    $region3: #{sparse_gradient_forward.1} parent=1 // pred_check_branch
      %9 = sbr.rel (0) target = $region5
    $region4: #{sparse_gradient_forward.1} parent=1 // pred_region
      _
    $region5: #{sparse_gradient_forward.1} parent=1 // pred_fallthru
      _
    // Predicated region
    $region6: #{sparse_gradient_forward.1} parent=1 // pred_check
      _
    $region7: #{sparse_gradient_forward.1} parent=1 // pred_check_branch
      %11 = sbr.rel (0) target = $region9
    $region8: #{sparse_gradient_forward.1} parent=1 // pred_region
      %s13 = ssub.s32 256, 256
      %14 = vsyncadd [#allocation3], %s13
      %s15 = sshll.u32 [#allocation2], 4
      %s16 = int_to_ptr.vmem [resolvable:$true] %s15
      %21 = dma.hbm_to_vmem [thread:$0]  %s1, 256, %s16, [#allocation3], 128, 128, 8
    $region9: #{sparse_gradient_forward.1} parent=1 // pred_fallthru
      _
    // Predicated region
    $region10: #{sparse_gradient_forward.1} parent=1 // pred_check
      _
    $region11: #{sparse_gradient_forward.1} parent=1 // pred_check_branch
      %23 = sbr.rel (0) target = $region13
    $region12: #{sparse_gradient_forward.1} parent=1 // pred_region
      %24 = dma.done [#allocation3], 256
    $region13: #{sparse_gradient_forward.1} parent=1 // pred_fallthru
      _
    %v25 = vld [vmem:[%s0] sm:$0xff]
    %v26 = vlaneseq
    %v27 = vand.u32 %v26, 127
    %28 = vset.pattern.permute.xlu0 0
    %29 = vperm.xlu0 %28, %v25
    %v30 = vpop.permute.xlu0 %29
    %vm31 = vcmp.eq.s32.totalorder %v27, %v30
    %v32 = vsel %vm31, 1, 0
    %33 = vset.pattern.permute.xlu0 1
    %34 = vperm.xlu0 %33, %v25
    %v35 = vpop.permute.xlu0 %34
    %vm36 = vcmp.eq.s32.totalorder %v27, %v35
    %v37 = vsel %vm36, 1, 0
    %v38 = vadd.s32 %v32, %v37
    %39 = vset.pattern.permute.xlu0 2
    %40 = vperm.xlu0 %39, %v25
    %v41 = vpop.permute.xlu0 %40
    %vm42 = vcmp.eq.s32.totalorder %v27, %v41
    %v43 = vsel %vm42, 1, 0
    %v44 = vadd.s32 %v38, %v43
    %45 = vset.pattern.permute.xlu0 3
    %46 = vperm.xlu0 %45, %v25
    %v47 = vpop.permute.xlu0 %46
    %vm48 = vcmp.eq.s32.totalorder %v27, %v47
    %v49 = vsel %vm48, 1, 0
    %v50 = vadd.s32 %v44, %v49
    %51 = vset.pattern.permute.xlu0 4
    %52 = vperm.xlu0 %51, %v25
    %v53 = vpop.permute.xlu0 %52
    %vm54 = vcmp.eq.s32.totalorder %v27, %v53
    %v55 = vsel %vm54, 1, 0
    %v56 = vadd.s32 %v50, %v55
    %57 = vset.pattern.permute.xlu0 5
    %58 = vperm.xlu0 %57, %v25
    %v59 = vpop.permute.xlu0 %58
    %vm60 = vcmp.eq.s32.totalorder %v27, %v59
    %v61 = vsel %vm60, 1, 0
    %v62 = vadd.s32 %v56, %v61
    %63 = vset.pattern.permute.xlu0 6
    %64 = vperm.xlu0 %63, %v25
    %v65 = vpop.permute.xlu0 %64
    %vm66 = vcmp.eq.s32.totalorder %v27, %v65
    %v67 = vsel %vm66, 1, 0
    %v68 = vadd.s32 %v62, %v67
    %69 = vset.pattern.permute.xlu0 7
    %70 = vperm.xlu0 %69, %v25
    %v71 = vpop.permute.xlu0 %70
    %vm72 = vcmp.eq.s32.totalorder %v27, %v71
    %v73 = vsel %vm72, 1, 0
    %v74 = vadd.s32 %v68, %v73
    %v75 = vcvt.s32.f32 %v74
    %v76 = vld [vmem:[#allocation2] sm:$0xff]
    %v77 = vld [vmem:[#allocation2 + $0x8] sm:$0xff]
    %vm78 = vcmask 130048
    %v80 = vsel %vm78, %v75, 0
    %82 = vmatprep.subr.mxu0 0.0
    %83 = vmatpush1.msra.mxu0 %v76
    %84 = vmatprep.subr.mxu0 0.0
    %85 = vmatpush1.msra.mxu0 %v77
    %86 = vmatprep.subr.mxu0 0.0
    %87 = vmatpush1.msra.mxu0 0.0
    %88 = vmatprep.subr.mxu0 0.0
    %89 = vmatpush1.msra.mxu0 0.0
    %90 = vmatprep.subr.mxu0 0.0
    %91 = vmatpush1.msra.mxu0 0.0
    %92 = vmatprep.subr.mxu0 0.0
    %93 = vmatpush1.msra.mxu0 0.0
    %94 = vmatprep.subr.mxu0 0.0
    %95 = vmatpush1.msra.mxu0 0.0
    %96 = vmatprep.subr.mxu0 0.0
    %97 = vmatpush1.msra.mxu0 0.0
    %98 = vmatprep.subr.mxu0 0.0
    %99 = vmatpush1.msra.mxu0 0.0
    %100 = vmatprep.subr.mxu0 0.0
    %101 = vmatpush1.msra.mxu0 0.0
    %102 = vmatprep.subr.mxu0 0.0
    %103 = vmatpush1.msra.mxu0 0.0
    %104 = vmatprep.subr.mxu0 0.0
    %105 = vmatpush1.msra.mxu0 0.0
    %106 = vmatprep.subr.mxu0 0.0
    %107 = vmatpush1.msra.mxu0 0.0
    %108 = vmatprep.subr.mxu0 0.0
    %109 = vmatpush1.msra.mxu0 0.0
    %110 = vmatprep.subr.mxu0 0.0
    %111 = vmatpush1.msra.mxu0 0.0
    %112 = vmatprep.subr.mxu0 0.0
    %113 = vmatpush1.msra.mxu0 0.0
    %114 = vmatprep.subr.mxu0 0.0
    %115 = vmatpush1.msra.mxu0 0.0
    %116 = vmatprep.subr.mxu0 0.0
    %117 = vmatpush1.msra.mxu0 0.0
    %118 = vmatprep.subr.mxu0 0.0
    %119 = vmatpush1.msra.mxu0 0.0
    %120 = vmatprep.subr.mxu0 0.0
    %121 = vmatpush1.msra.mxu0 0.0
    %122 = vmatprep.subr.mxu0 0.0
    %123 = vmatpush1.msra.mxu0 0.0
    %124 = vmatprep.subr.mxu0 0.0
    %125 = vmatpush1.msra.mxu0 0.0
    %126 = vmatprep.subr.mxu0 0.0
    %127 = vmatpush1.msra.mxu0 0.0
    %128 = vmatprep.subr.mxu0 0.0
    %129 = vmatpush1.msra.mxu0 0.0
    %130 = vmatprep.subr.mxu0 0.0
    %131 = vmatpush1.msra.mxu0 0.0
    %132 = vmatprep.subr.mxu0 0.0
    %133 = vmatpush1.msra.mxu0 0.0
    %134 = vmatprep.subr.mxu0 0.0
    %135 = vmatpush1.msra.mxu0 0.0
    %136 = vmatprep.subr.mxu0 0.0
    %137 = vmatpush1.msra.mxu0 0.0
    %138 = vmatprep.subr.mxu0 0.0
    %139 = vmatpush1.msra.mxu0 0.0
    %140 = vmatprep.subr.mxu0 0.0
    %141 = vmatpush1.msra.mxu0 0.0
    %142 = vmatprep.subr.mxu0 0.0
    %143 = vmatpush1.msra.mxu0 0.0
    %144 = vmatprep.subr.mxu0 0.0
    %145 = vmatpush1.msra.mxu0 0.0
    %146 = vmatprep.mubr.f32.mxu0 0.0
    %147 = vmatmul.mubr.f32.gmra.mrb[0].mxu0 %v80
    %v148 = vpop.f32.mrb[0].mxu0
    %v149 = vadd.f32 0.0, %v148
    %v150 = vpop.f32.mrb[0].mxu0
    %151 = vdwg.mxu0
    %v152 = vmul.f32 %v149, 0.125
    %vm153 = vcmp.lt.s32.totalorder %v27, 10
    %v154 = vsel %vm153, %v152, -1e+30
    %155 = vmax.xlane.f32.xlu0 %v154
    %v156 = vpop.xlane.xlu0 %155
    %v157 = vsub.f32 %v154, %v156
    %v158 = vmul.f32 %v157, 1.442695
    %v159 = vpow.pop %v158
    %v160 = vsel %vm153, %v159, 0.0
    %161 = vadd.xlane.f32.xlu0 %v160
    %v162 = vpop.xlane.xlu0 %161
    %v163 = vrcp.pop %v162
    %v164 = vmul.f32 %v160, %v163
    %165 = vst [vmem:[%s2] sm:$0xff] %v164
    // Predicated region
    $region14: #{sparse_gradient_forward.1} parent=1 // pred_check
      _
    $region15: #{sparse_gradient_forward.1} parent=1 // pred_check_branch
      %167 = sbr.rel (0) target = $region17
    $region16: #{sparse_gradient_forward.1} parent=1 // pred_region
      _
    $region17: #{sparse_gradient_forward.1} parent=1 // pred_fallthru
      _
    // Predicated region
    $region18: #{sparse_gradient_forward.1} parent=1 // pred_check
      _
    $region19: #{sparse_gradient_forward.1} parent=1 // pred_check_branch
      %169 = sbr.rel (0) target = $region21
    $region20: #{sparse_gradient_forward.1} parent=1 // pred_region
      _
    $region21: #{sparse_gradient_forward.1} parent=1 // pred_fallthru
      _
    %170 = vsyncpa [#allocation3], 1

</llo_original>
